<compile_context>
chip_gen: v5e
topology: v5e:2x2
jax: 0.10.0
libtpu: 0.0.40
codegen_flags: <defaults>
</compile_context>

<pallas_src>
import jax
import jax.numpy as jnp
from jax.experimental import pallas as pl
from jax.experimental.pallas import tpu as pltpu


def _onematrix_kernel(param_ref, out_ref):
    # param_ref: (C, H*W) VMEM tile -- same (constant) block every grid step.
    # out_ref:   (TB, C, H*W) lane-dense output tile for TB batch elements.
    #
    # One sigmoid pass per *grid step* (not per batch element); math in f32,
    # cast only on store.
    sig = jax.nn.sigmoid(param_ref[...].astype(jnp.float32))
    out_ref[...] = jnp.broadcast_to(sig[None], out_ref.shape).astype(out_ref.dtype)


def onematrix_forward(param: jax.Array, images: jax.Array, out_dtype=None) -> jax.Array:
    """Pallas implementation of ONEMATRIX.forward (eval path, raw_sem_seg).

    param:  (n_classes, H, W) float32 -- the learnable tensor.
    images: (B, C_img, H, W) -- only the batch dimension is used (pixel values
            never enter the compute, exactly as in the PyTorch module).
    returns: (B, n_classes, H, W) -- sigmoid(param) broadcast over the batch.
    """
    B = images.shape[0]
    C, H, W = param.shape
    HW = H * W
    dtype = jnp.dtype(out_dtype) if out_dtype is not None else param.dtype

    # Pick the batch-tile size TB: the largest divisor of B whose output tile
    # stays under a few MiB (tile is double-buffered by the pipeline, so this
    # also keeps us well inside v7x's 64 MiB VMEM / 32 MiB scoped default).
    bytes_per_batch = C * HW * dtype.itemsize
    target_tile_bytes = 4 * 1024 * 1024
    TB = 1
    for cand in range(1, B + 1):
        if B % cand == 0 and cand * bytes_per_batch <= target_tile_bytes:
            TB = cand

    # Flatten spatial dims -> lane-dense last dim (H*W instead of W).
    param2d = param.reshape(C, HW)

    out_flat = pl.pallas_call(
        _onematrix_kernel,
        out_shape=jax.ShapeDtypeStruct((B, C, HW), dtype),
        grid_spec=pltpu.PrefetchScalarGridSpec(
            num_scalar_prefetch=0,
            grid=(B // TB,),
            in_specs=[
                # Full-parameter block; identical for every grid step (tiny
                # here, so double-buffering it costs nothing -- if C*H*W grows
                # large, single-buffer it or tile over C as well).
                pl.BlockSpec((C, HW), lambda b: (0, 0)),
            ],
            out_specs=pl.BlockSpec((TB, C, HW), lambda b: (b, 0, 0)),
        ),
        compiler_params=pltpu.CompilerParams(
            # Batch-tile steps are fully independent -> shard across the two
            # TensorCores on v7x; harmless elsewhere.
            dimension_semantics=("parallel",),
        ),
    )(param2d)

    return out_flat.reshape(B, C, H, W)


if __name__ == "__main__":
    # Small, deterministic configuration consistent with the module:
    #   n_classes=4, img_sizes=(16, 16), batch=2, image channels=3.
    n_classes = 4
    img_sizes = (16, 16)
    B = 2

    key = jax.random.PRNGKey(0)
    k_param, k_img = jax.random.split(key)

    # torch.randn((n_classes, H, W)) equivalent, deterministic in-script.
    param = jax.random.normal(
        k_param, (n_classes, img_sizes[0], img_sizes[1]), dtype=jnp.float32
    )
    # Batched input images (values unused by the forward math, only B matters).
    images = jax.random.normal(
        k_img, (B, 3, img_sizes[0], img_sizes[1]), dtype=jnp.float32
    )

    out = onematrix_forward(param, images)
    out = jax.block_until_ready(out)

    # Reference check against plain JAX semantics of the PyTorch forward.
    ref = jnp.broadcast_to(
        jax.nn.sigmoid(param)[None], (B, n_classes, img_sizes[0], img_sizes[1])
    )
    assert out.shape == (B, n_classes, img_sizes[0], img_sizes[1])
    assert jnp.allclose(out, ref, atol=1e-6), "mismatch vs reference"

    print("KERNEL_OK")
</pallas_src>

<mosaic_0001>
module attributes {stable_mosaic.version = 11 : i64} {
  func.func @_onematrix_kernel(%arg0: i32, %arg1: memref<4x256xf32, #tpu.memory_space<vmem>>, %arg2: memref<2x4x256xf32, #tpu.memory_space<vmem>>) attributes {dimension_semantics = [#tpu.dimension_semantics<parallel>], iteration_bounds = array<i64: 1>, scalar_prefetch = 0 : i64, scratch_operands = 0 : i64, tpu.core_type = #tpu.core_type<tc>, window_params = [{pipeline_mode = #tpu.pipeline_mode<synchronous>, transform_indices = @transform_0, window_bounds = array<i64: 4, 256>}, {transform_indices = @transform_1, window_bounds = array<i64: 2, 4, 256>}]} {
    %c0 = arith.constant 0 : index
    %c0_0 = arith.constant 0 : index
    %0 = vector.load %arg1[%c0, %c0_0] : memref<4x256xf32, #tpu.memory_space<vmem>>, vector<4x256xf32>
    %1 = arith.negf %0 : vector<4x256xf32>
    %2 = math.exp %1 : vector<4x256xf32>
    %cst = arith.constant 1.000000e+00 : f32
    %3 = vector.broadcast %cst : f32 to vector<4x256xf32>
    %4 = arith.addf %3, %2 : vector<4x256xf32>
    %5 = arith.divf %3, %4 : vector<4x256xf32>
    %6 = vector.shape_cast %5 : vector<4x256xf32> to vector<1x4x256xf32>
    %7 = vector.shape_cast %6 : vector<1x4x256xf32> to vector<1x4x256xf32>
    %8 = vector.broadcast %7 : vector<1x4x256xf32> to vector<2x4x256xf32>
    %c0_1 = arith.constant 0 : index
    %c0_2 = arith.constant 0 : index
    %c0_3 = arith.constant 0 : index
    %9 = vector.load %arg2[%c0_1, %c0_2, %c0_3] : memref<2x4x256xf32, #tpu.memory_space<vmem>>, vector<2x4x256xf32>
    tpu.vector_store %arg2[%c0_1, %c0_2, %c0_3], %8 {strides = array<i32>} : memref<2x4x256xf32, #tpu.memory_space<vmem>>, vector<2x4x256xf32>,
    return
  }
  func.func @transform_0(%arg0: i32) -> (i32, i32) {
    %c0_i32 = arith.constant 0 : i32
    %c0_i32_0 = arith.constant 0 : i32
    %c0_i32_1 = arith.constant 0 : i32
    return %c0_i32, %c0_i32_0 : i32, i32
  }
  func.func @transform_1(%arg0: i32) -> (i32, i32, i32) {
    %c0_i32 = arith.constant 0 : i32
    %c0_i32_0 = arith.constant 0 : i32
    %c0_i32_1 = arith.constant 0 : i32
    return %arg0, %c0_i32, %c0_i32_0 : i32, i32, i32
  }
}

</mosaic_0001>

<llo_original>
// kernel: tpu_custom_call.1
$region0: #{tpu_custom_call.1}
  #allocation0 [shape = 'u32[]', space=smem, size = 0x4, offset = 0x4, fixed_abs, tag = 'smem constant byte address 0x4 - core index']
  #allocation1 [shape = 'u32[72,128]{1,0:T(1,128)}', space=vmem, size = 0x9000, scoped, tag = 'internal scratch']
  %s0 = inlined_call_operand.hbm [shape: f32[4,256], index: 0, kind: input, shape index: {}]
  %s1 = inlined_call_operand.hbm [shape: f32[2,4,256], index: 1, kind: output, shape index: {}]
  %s2 = sld [smem:[#allocation0]]
  $region18: #{tpu_custom_call.1} parent=0
    _
  %s4 = ssub.s32 1, %s2
  %s5 = scalar_select 0, %s4, %s2
  $region1: #{tpu_custom_call.1} parent=0
    #allocation2 [shape = 'u8[4096]{0}', space=vmem, size = 0x1000, scoped, tag = 'input window, operand 0, single buffered']
    #allocation3 [shape = 's32[1]{0}', space=sflag, size = 0x4, scoped, tag = 'scoped memory for tpu_custom_call.1']
    #allocation4 [shape = 's32[1]{0}', space=sflag, size = 0x4, scoped, tag = 'scoped memory for tpu_custom_call.1']
    #allocation5 [shape = 'u8[8192]{0}', space=vmem, size = 0x2000, scoped, tag = 'output window, operand 0, single buffered']
    %6 = vsyncpa [#allocation3], 0
    %7 = vsyncpa [#allocation4], 0
    // Predicated region
    $region2: #{tpu_custom_call.1} parent=1 // pred_check
      _
    $region3: #{tpu_custom_call.1} parent=1 // pred_check_branch
      %9 = sbr.rel (0) target = $region5
    $region4: #{tpu_custom_call.1} parent=1 // pred_region
      %11 = vsyncadd [#allocation3], 0
      %s13 = sshll.u32 %s0, 4
      %s14 = int_to_ptr.hbm [resolvable:$true] %s13
      %s15 = sshll.u32 [#allocation2], 4
      %s16 = int_to_ptr.vmem [resolvable:$true] %s15
      %18 = dma.hbm_to_vmem [thread:$0]  %s14, 128, %s16, [#allocation3]
    $region5: #{tpu_custom_call.1} parent=1 // pred_fallthru
      _
    // Predicated region
    $region6: #{tpu_custom_call.1} parent=1 // pred_check
      _
    $region7: #{tpu_custom_call.1} parent=1 // pred_check_branch
      %20 = sbr.rel (0) target = $region9
    $region8: #{tpu_custom_call.1} parent=1 // pred_region
      %22 = dma.done [#allocation3], 128
    $region9: #{tpu_custom_call.1} parent=1 // pred_fallthru
      _
    %v23 = vld [vmem:[#allocation2] sm:$0xff]
    %v24 = vxor.u32 %v23, 2147483648
    %v25 = vmul.f32 %v24, 1.442695
    %v26 = vpow.pop %v25
    %v27 = vadd.f32 %v26, 1.0
    %v28 = vrcp.pop %v27
    %v29 = vmul.f32 %v27, %v28
    %v30 = vsub.f32 1.0, %v29
    %v31 = vmul.f32 %v28, %v30
    %v32 = vadd.f32 %v28, %v31
    %vm33 = vweird.f32 %v27
    %vm34 = vweird.f32 %v28
    %vm35 = vmor %vm33, %vm34
    %v36 = vsel %vm35, %v28, %v32
    %v37 = vand.u32 2147483647, %v27
    %vm38 = vcmp.eq.f32.partialorder %v37, 8.507059e+37
    %v39 = vand.u32 %v27, 2147483648
    %v40 = vor.u32 1.1754944e-38, %v39
    %v41 = vsel %vm38, %v40, %v36
    %v42 = vmul.f32 1.0, %v41
    %43 = vst [vmem:[#allocation5] sm:$0xff] %v42
    %44 = vst [vmem:[#allocation5 + $0x8] sm:$0xff] %v42
    // Predicated region
    $region10: #{tpu_custom_call.1} parent=1 // pred_check
      _
    $region11: #{tpu_custom_call.1} parent=1 // pred_check_branch
      %46 = sbr.rel (0) target = $region13
    $region12: #{tpu_custom_call.1} parent=1 // pred_region
      %48 = vsyncadd [#allocation4], 0
      %s49 = sshll.u32 [#allocation5], 4
      %s50 = int_to_ptr.vmem [resolvable:$true] %s49
      %s51 = sshll.u32 %s1, 4
      %s52 = int_to_ptr.hbm [resolvable:$true] %s51
      %57 = dma.vmem_to_hbm [thread:$0]  %s50, 256, %s52, [#allocation4], 128, 128, 8
    $region13: #{tpu_custom_call.1} parent=1 // pred_fallthru
      _
    // Predicated region
    $region14: #{tpu_custom_call.1} parent=1 // pred_check
      _
    $region15: #{tpu_custom_call.1} parent=1 // pred_check_branch
      %59 = sbr.rel (0) target = $region17
    $region16: #{tpu_custom_call.1} parent=1 // pred_region
      %61 = dma.done [#allocation4], 256
    $region17: #{tpu_custom_call.1} parent=1 // pred_fallthru
      _
    %62 = vsyncpa [#allocation3], 1
    %63 = vsyncpa [#allocation4], 1

</llo_original>
